<compile_context>
chip_gen: v5e
topology: v5e:2x2
jax: 0.10.0
libtpu: 0.0.40
codegen_flags: <defaults>
</compile_context>

<pallas_src>
import functools

import jax
import jax.numpy as jnp
from jax.experimental import pallas as pl
from jax.experimental.pallas import tpu as pltpu

LANES = 128
SUBLANES = 8
MAX_ROW_TILE = 4096   # 4096 x 128 f32 = 2 MiB per input per grid step
NCORES = 2            # v7x has 2 TCs; on v5e/v6e this is just a serial outer axis


def _sse_kernel(x_ref, t_ref, o_ref, acc_ref, *, rows, row_tile, need_mask):
    c = pl.program_id(0)
    j = pl.program_id(1)
    steps = pl.num_programs(1)

    @pl.when(j == 0)
    def _():
        acc_ref[...] = jnp.zeros_like(acc_ref)

    d = x_ref[...].astype(jnp.float32) - t_ref[...].astype(jnp.float32)
    sq = d * d

    if need_mask:
        # Zero out rows past the logical end of the (rows, 128) input. Covers both
        # the ragged last block and fully-out-of-range blocks when the block count
        # does not split evenly across cores.
        base = (c * steps + j) * row_tile
        row_ids = base + jax.lax.broadcasted_iota(jnp.int32, (row_tile, LANES), 0)
        sq = jnp.where(row_ids < rows, sq, 0.0)

    # Fold the (row_tile, 128) tile onto the (8, 128) accumulator: pure VPU vreg
    # adds — no per-step cross-lane reduce, no per-step scalar serialization.
    acc_ref[...] += sq.reshape(row_tile // SUBLANES, SUBLANES, LANES).sum(axis=0)

    @pl.when(j == steps - 1)
    def _():
        # Single cross-sublane/lane reduce per core, written to the SMEM output.
        o_ref[0, 0] = jnp.sum(acc_ref[...])


def _sse_pallas(x2d, t2d, *, rows, row_tile):
    total_blocks = pl.cdiv(rows, row_tile)
    ncores = NCORES if total_blocks >= NCORES else 1
    steps = pl.cdiv(total_blocks, ncores)
    need_mask = (ncores * steps * row_tile) > rows

    if ncores * steps > total_blocks:
        # Clamp out-of-range block indices; their contribution is masked to zero
        # inside the kernel (row_ids >= rows).
        def in_map(c, j):
            return (jnp.minimum(c * steps + j, total_blocks - 1), 0)
    else:
        def in_map(c, j):
            return (c * steps + j, 0)

    kernel = functools.partial(
        _sse_kernel, rows=rows, row_tile=row_tile, need_mask=need_mask)

    n_bytes = 2 * rows * LANES * x2d.dtype.itemsize
    return pl.pallas_call(
        kernel,
        out_shape=jax.ShapeDtypeStruct((ncores, 1), jnp.float32),
        grid_spec=pltpu.PrefetchScalarGridSpec(
            num_scalar_prefetch=0,
            grid=(ncores, steps),
            in_specs=[
                pl.BlockSpec((row_tile, LANES), in_map),
                pl.BlockSpec((row_tile, LANES), in_map),
            ],
            out_specs=pl.BlockSpec(
                (1, 1), lambda c, j: (c, 0), memory_space=pltpu.SMEM),
            scratch_shapes=[pltpu.VMEM((SUBLANES, LANES), jnp.float32)],
        ),
        compiler_params=pltpu.CompilerParams(
            # outer axis: independent per-core partial sums; inner: reduction.
            dimension_semantics=("parallel", "arbitrary"),
        ),
        cost_estimate=pl.CostEstimate(
            flops=3 * rows * LANES, transcendentals=0, bytes_accessed=n_bytes),
    )(x2d, t2d)


def content_loss(x, target, row_tile=None):
    """Pallas equivalent of ContentLoss.forward:
       MSELoss(reduction='sum')(x, target.detach()) / (c * h * w).

    x, target: NCHW arrays of the same shape (f32 or bf16; accumulation is f32
    in-kernel). Returns a float32 scalar.
    """
    _, c, h, w = x.shape
    n = x.size

    xf = x.reshape(-1)
    tf = target.reshape(-1)

    # Pad only when the flat size is not a multiple of one (8,128) vreg tile
    # (never for typical conv feature maps). Zero-padding both operands
    # identically contributes 0 to the squared-difference sum.
    pad = (-n) % (SUBLANES * LANES)
    if pad:
        # TODO(synk): a lane-level in-kernel mask would avoid this copy for sizes
        # that are not a multiple of 1024 elements.
        xf = jnp.pad(xf, (0, pad))
        tf = jnp.pad(tf, (0, pad))

    rows = (n + pad) // LANES          # always a multiple of 8 here
    x2d = xf.reshape(rows, LANES)
    t2d = tf.reshape(rows, LANES)

    if row_tile is None:
        row_tile = min(MAX_ROW_TILE, rows)
    assert row_tile == rows or row_tile % SUBLANES == 0

    partials = _sse_pallas(x2d, t2d, rows=rows, row_tile=row_tile)
    sse = jnp.sum(partials)
    # NB: divisor is c*h*w (matches the module spec), not n*c*h*w.
    return sse / jnp.float32(c * h * w)


if __name__ == "__main__":
    key = jax.random.PRNGKey(0)
    kx, kt = jax.random.split(key)

    # Primary case (matches the module's NCHW usage).
    shape = (2, 4, 16, 16)  # N, C, H, W
    x = jax.random.normal(kx, shape, dtype=jnp.float32)
    target = jax.random.normal(kt, shape, dtype=jnp.float32)
    loss = jax.jit(content_loss)(x, target)
    jax.block_until_ready(loss)
    ref = jnp.sum((x - target) ** 2) / (shape[1] * shape[2] * shape[3])
    assert jnp.allclose(loss, ref, rtol=1e-5, atol=1e-5), (loss, ref)

    # Exercise the multi-block / 2-core split / masked-tail path with a small
    # forced row_tile (rows=24, row_tile=8 -> 3 blocks over a (2, 2) grid).
    shape2 = (1, 3, 32, 32)
    x2 = jax.random.normal(kx, shape2, dtype=jnp.float32)
    t2 = jax.random.normal(kt, shape2, dtype=jnp.float32)
    loss2 = jax.jit(functools.partial(content_loss, row_tile=8))(x2, t2)
    jax.block_until_ready(loss2)
    ref2 = jnp.sum((x2 - t2) ** 2) / (shape2[1] * shape2[2] * shape2[3])
    assert jnp.allclose(loss2, ref2, rtol=1e-5, atol=1e-5), (loss2, ref2)

    print("KERNEL_OK")
</pallas_src>

<mosaic_0001>
module attributes {stable_mosaic.version = 11 : i64} {
  func.func @_sse_kernel(%arg0: i32, %arg1: i32, %arg2: memref<16x128xf32, #tpu.memory_space<vmem>>, %arg3: memref<16x128xf32, #tpu.memory_space<vmem>>, %arg4: memref<1x1xf32, #tpu.memory_space<smem>>, %arg5: memref<8x128xf32, #tpu.memory_space<vmem>>) attributes {dimension_semantics = [#tpu.dimension_semantics<parallel>, #tpu.dimension_semantics<arbitrary>], iteration_bounds = array<i64: 1, 1>, scalar_prefetch = 0 : i64, scratch_operands = 1 : i64, tpu.core_type = #tpu.core_type<tc>, window_params = [{transform_indices = @transform_0, window_bounds = array<i64: 16, 128>}, {transform_indices = @transform_1, window_bounds = array<i64: 16, 128>}, {transform_indices = @transform_2, window_bounds = array<i64: 1, 1>}]} {
    %c0_i32 = arith.constant 0 : i32
    %0 = arith.cmpi eq, %arg1, %c0_i32 : i32
    %1 = arith.extui %0 : i1 to i32
    %c0_i32_0 = arith.constant 0 : i32
    %2 = arith.cmpi ne, %1, %c0_i32_0 : i32
    scf.if %2 {
      %cst_10 = arith.constant 0.000000e+00 : f32
      %15 = vector.broadcast %cst_10 : f32 to vector<8x128xf32>
      %c0_11 = arith.constant 0 : index
      %c0_12 = arith.constant 0 : index
      %16 = vector.load %arg5[%c0_11, %c0_12] : memref<8x128xf32, #tpu.memory_space<vmem>>, vector<8x128xf32>
      tpu.vector_store %arg5[%c0_11, %c0_12], %15 {strides = array<i32>} : memref<8x128xf32, #tpu.memory_space<vmem>>, vector<8x128xf32>,
    } else {
    }
    %c0 = arith.constant 0 : index
    %c0_1 = arith.constant 0 : index
    %3 = vector.load %arg2[%c0, %c0_1] : memref<16x128xf32, #tpu.memory_space<vmem>>, vector<16x128xf32>
    %c0_2 = arith.constant 0 : index
    %c0_3 = arith.constant 0 : index
    %4 = vector.load %arg3[%c0_2, %c0_3] : memref<16x128xf32, #tpu.memory_space<vmem>>, vector<16x128xf32>
    %5 = arith.subf %3, %4 : vector<16x128xf32>
    %6 = arith.mulf %5, %5 : vector<16x128xf32>
    %c0_4 = arith.constant 0 : index
    %c0_5 = arith.constant 0 : index
    %7 = vector.load %arg5[%c0_4, %c0_5] : memref<8x128xf32, #tpu.memory_space<vmem>>, vector<8x128xf32>
    %8 = vector.shape_cast %6 : vector<16x128xf32> to vector<2x8x128xf32>
    %cst = arith.constant dense<0.000000e+00> : vector<8x128xf32>
    %9 = vector.multi_reduction <add>, %8, %cst [0] : vector<2x8x128xf32> to vector<8x128xf32>
    %10 = arith.addf %7, %9 : vector<8x128xf32>
    %c0_6 = arith.constant 0 : index
    %c0_7 = arith.constant 0 : index
    %11 = vector.load %arg5[%c0_6, %c0_7] : memref<8x128xf32, #tpu.memory_space<vmem>>, vector<8x128xf32>
    tpu.vector_store %arg5[%c0_6, %c0_7], %10 {strides = array<i32>} : memref<8x128xf32, #tpu.memory_space<vmem>>, vector<8x128xf32>,
    %c0_i32_8 = arith.constant 0 : i32
    %12 = arith.cmpi eq, %arg1, %c0_i32_8 : i32
    %13 = arith.extui %12 : i1 to i32
    %c0_i32_9 = arith.constant 0 : i32
    %14 = arith.cmpi ne, %13, %c0_i32_9 : i32
    scf.if %14 {
      %c0_10 = arith.constant 0 : index
      %c0_11 = arith.constant 0 : index
      %15 = vector.load %arg5[%c0_10, %c0_11] : memref<8x128xf32, #tpu.memory_space<vmem>>, vector<8x128xf32>
      %16 = vector.shape_cast %15 : vector<8x128xf32> to vector<1x8x128xf32>
      %cst_12 = arith.constant dense<0.000000e+00> : vector<1xf32>
      %17 = vector.multi_reduction <add>, %16, %cst_12 [1, 2] : vector<1x8x128xf32> to vector<1xf32>
      %18 = vector.shape_cast %17 : vector<1xf32> to vector<1x1x1xf32>
      %19 = vector.extract %18[0, 0, 0] : f32 from vector<1x1x1xf32>
      %c0_13 = arith.constant 0 : index
      %c0_14 = arith.constant 0 : index
      %20 = memref.load %arg4[%c0_13, %c0_14] : memref<1x1xf32, #tpu.memory_space<smem>>
      memref.store %19, %arg4[%c0_13, %c0_14] : memref<1x1xf32, #tpu.memory_space<smem>>
    } else {
    }
    return
  }
  func.func @transform_0(%arg0: i32, %arg1: i32) -> (i32, i32) {
    %c1_i32 = arith.constant 1 : i32
    %0 = arith.muli %arg0, %c1_i32 : i32
    %1 = arith.addi %0, %arg1 : i32
    %c0_i32 = arith.constant 0 : i32
    %c0_i32_0 = arith.constant 0 : i32
    return %1, %c0_i32 : i32, i32
  }
  func.func @transform_1(%arg0: i32, %arg1: i32) -> (i32, i32) {
    %c1_i32 = arith.constant 1 : i32
    %0 = arith.muli %arg0, %c1_i32 : i32
    %1 = arith.addi %0, %arg1 : i32
    %c0_i32 = arith.constant 0 : i32
    %c0_i32_0 = arith.constant 0 : i32
    return %1, %c0_i32 : i32, i32
  }
  func.func @transform_2(%arg0: i32, %arg1: i32) -> (i32, i32) {
    %c0_i32 = arith.constant 0 : i32
    %c0_i32_0 = arith.constant 0 : i32
    return %arg0, %c0_i32 : i32, i32
  }
}

</mosaic_0001>

<llo_original>
// kernel: content_loss.1
$region0: #{content_loss.1}
  #allocation0 [shape = 'u32[]', space=smem, size = 0x4, offset = 0x4, fixed_abs, tag = 'smem constant byte address 0x4 - core index']
  #allocation1 [shape = 'u32[72,128]{1,0:T(1,128)}', space=vmem, size = 0x9000, scoped, tag = 'internal scratch']
  #allocation2 [shape = 'f32[8,128]{1,0:T(8,128)}', space=vmem, size = 0x1000, scoped, tag = 'scratch operand']
  %s0 = inlined_call_operand.vmem [shape: f32[16,128], index: 0, kind: input, shape index: {}]
  %s1 = inlined_call_operand.vmem [shape: f32[16,128], index: 1, kind: input, shape index: {}]
  %s2 = inlined_call_operand.hbm [shape: f32[1,1], index: 2, kind: output, shape index: {}]
  %s3 = sld [smem:[#allocation0]]
  $region26: #{content_loss.1} parent=0
    _
  %s5 = ssub.s32 1, %s3
  %s6 = scalar_select 0, %s5, %s3
  $region1: #{content_loss.1} parent=0
    #allocation3 [shape = 'u8[512]{0}', space=smem, size = 0x200, scoped, tag = 'output window, operand 0, single buffered']
    #allocation4 [shape = 's32[1]{0}', space=sflag, size = 0x4, scoped, tag = 'scoped memory for content_loss.1']
    %7 = vsyncpa [#allocation4], 0
    // Predicated region
    $region2: #{content_loss.1} parent=1 // pred_check
      _
    $region3: #{content_loss.1} parent=1 // pred_check_branch
      %9 = sbr.rel (0) target = $region5
    $region4: #{content_loss.1} parent=1 // pred_region
      %s10 = sadd.s32 0, 0
      %s11 = smul.u32 2, %s10
      %p12 = scmp.lt.s32.totalorder %s11, 1
      %s13 = scalar_select %p12, %s11, 1
      %s14 = smul.addr %s13, 8
      %s15 = scalar_lea.vmem %s0, %s14
      %s16 = sadd.s32 0, 0
      %s17 = smul.u32 2, %s16
    $region5: #{content_loss.1} parent=1 // pred_fallthru
      _
    // Predicated region
    $region6: #{content_loss.1} parent=1 // pred_check
      _
    $region7: #{content_loss.1} parent=1 // pred_check_branch
      %19 = sbr.rel (0) target = $region9
    $region8: #{content_loss.1} parent=1 // pred_region
      %s20 = sadd.s32 0, 0
      %s21 = smul.u32 2, %s20
      %p22 = scmp.lt.s32.totalorder %s21, 1
      %s23 = scalar_select %p22, %s21, 1
      %s24 = smul.addr %s23, 8
      %s25 = scalar_lea.vmem %s1, %s24
      %s26 = sadd.s32 0, 0
      %s27 = smul.u32 2, %s26
    $region9: #{content_loss.1} parent=1 // pred_fallthru
      _
    %s28 = sadd.s32 0, 0
    %s29 = smul.u32 2, %s28
    %p30 = scmp.lt.s32.totalorder %s29, 1
    %s31 = scalar_select %p30, %s29, 1
    %s32 = smul.addr %s31, 8
    %s33 = scalar_lea.vmem %s0, %s32
    %s34 = sadd.s32 0, 0
    %s35 = smul.u32 2, %s34
    %p36 = scmp.lt.s32.totalorder %s35, 1
    %s37 = scalar_select %p36, %s35, 1
    %s38 = smul.addr %s37, 8
    %s39 = scalar_lea.vmem %s1, %s38
    %s40 = sadd.s32 0, 0
    %s41 = smul.u32 2, %s40
    %p42 = scmp.lt.s32.totalorder %s41, 1
    %s43 = scalar_select %p42, %s41, 1
    %s44 = smul.addr %s43, 8
    %s45 = scalar_lea.vmem %s0, %s44
    %s46 = sadd.s32 0, 0
    %s47 = smul.u32 2, %s46
    %s48 = sadd.s32 0, 0
    %s49 = smul.u32 2, %s48
    %p50 = scmp.lt.s32.totalorder %s49, 1
    %s51 = scalar_select %p50, %s49, 1
    %s52 = smul.addr %s51, 8
    %s53 = scalar_lea.vmem %s1, %s52
    %s54 = sadd.s32 0, 0
    %s55 = smul.u32 2, %s54
    %p56 = scmp.eq.s32.totalorder 0, 0
    // Predicated region
    $region10: #{content_loss.1} parent=1 // pred_check
      %p57 = pneg %p56
    $region11: #{content_loss.1} parent=1 // pred_check_branch
      %59 = sbr.rel (%p57) target = $region13
    $region12: #{content_loss.1} parent=1 // pred_region
      %60 = vst [vmem:[#allocation2] sm:$0xff] 0.0
    $region13: #{content_loss.1} parent=1 // pred_fallthru
      _
    %v61 = vld [vmem:[%s45] sm:$0xff]
    %v62 = vld [vmem:[%s45 + $0x8] sm:$0xff]
    %v63 = vld [vmem:[%s53] sm:$0xff]
    %v64 = vld [vmem:[%s53 + $0x8] sm:$0xff]
    %v65 = vsub.f32 %v61, %v63
    %v66 = vsub.f32 %v62, %v64
    %v67 = vmul.f32 %v65, %v65
    %v68 = vmul.f32 %v66, %v66
    %v69 = vld [vmem:[#allocation2] sm:$0xff]
    %v70 = vadd.f32 %v67, %v68
    %v71 = vadd.f32 %v69, %v70
    %72 = vst [vmem:[#allocation2] sm:$0xff] %v71
    // Predicated region
    $region14: #{content_loss.1} parent=1 // pred_check
      %p73 = pneg %p56
    $region15: #{content_loss.1} parent=1 // pred_check_branch
      %75 = sbr.rel (%p73) target = $region17
    $region16: #{content_loss.1} parent=1 // pred_region
      %v76 = vld [vmem:[#allocation2] sm:$0xff]
      %77 = vadd.xlane.f32.xlu0 %v76
      %v78 = vpop.xlane.xlu0 %77
      %v79 = vrot.slane %v78, 4
      %v80 = vadd.f32 %v78, %v79
      %v81 = vrot.slane %v80, 2
      %v82 = vadd.f32 %v80, %v81
      %v83 = vrot.slane %v82, 1
      %v84 = vadd.f32 %v82, %v83
      %s85 = vtos %v84
      %s86 = scalar_lea.smem [#allocation3], 0
      %87 = sst [smem:[%s86]] %s85
    $region17: #{content_loss.1} parent=1 // pred_fallthru
      _
    // Predicated region
    $region18: #{content_loss.1} parent=1 // pred_check
      _
    $region19: #{content_loss.1} parent=1 // pred_check_branch
      %89 = sbr.rel (0) target = $region21
    $region20: #{content_loss.1} parent=1 // pred_region
      %91 = vsyncadd [#allocation4], 0
      %s93 = sshll.u32 %s2, 4
      %s94 = int_to_ptr.hbm [resolvable:$true] %s93
      %96 = dma.smem_to_hbm [#allocation3], 16, %s94, [#allocation4]
    $region21: #{content_loss.1} parent=1 // pred_fallthru
      _
    // Predicated region
    $region22: #{content_loss.1} parent=1 // pred_check
      _
    $region23: #{content_loss.1} parent=1 // pred_check_branch
      %98 = sbr.rel (0) target = $region25
    $region24: #{content_loss.1} parent=1 // pred_region
      %100 = dma.done [#allocation4], 16
    $region25: #{content_loss.1} parent=1 // pred_fallthru
      _
    %101 = sfence
    %102 = vsyncpa [#allocation4], 1

</llo_original>
